<compile_context>
chip_gen: v7x
topology: tpu7x:2x2x1
jax: 0.10.0
libtpu: 0.0.40
codegen_flags: <defaults>
</compile_context>

<pallas_src>
import functools

import numpy as np
import jax
import jax.numpy as jnp
from jax import lax
from jax.experimental import pallas as pl
from jax.experimental.pallas import tpu as pltpu


def _gumbel_argmax_onehot_kernel(logp_ref, unif_ref, out_ref):
    """One grid step over a (block_rows, C) tile.

    r = logprobs + Gumbel(0,1) noise; write one-hot of argmax(r, axis=-1).
    (No softmax / temperature divide: they cannot change the argmax.)
    """
    x = logp_ref[...].astype(jnp.float32)                       # (bm, C)

    # Gumbel(0,1) from U(0,1): g = -log(-log(u)); clamp away exact zero.
    u = jnp.maximum(unif_ref[...].astype(jnp.float32), 1e-20)
    g = -jnp.log(-jnp.log(u))

    r = x + g

    # argmax over last dim -> one-hot (first index wins on ties, like torch.argmax).
    m = jnp.max(r, axis=-1, keepdims=True)                      # XLU lane reduce #1
    iota = lax.broadcasted_iota(jnp.int32, r.shape, dimension=1)
    sentinel = jnp.int32(r.shape[-1])
    first_idx = jnp.min(jnp.where(r >= m, iota, sentinel),      # XLU lane reduce #2
                        axis=-1, keepdims=True)
    out_ref[...] = (iota == first_idx).astype(out_ref.dtype)


def _pick_block_rows(n_rows, n_classes, out_bytes, vmem_budget_bytes=12 * 1024 * 1024):
    """Largest row tile (multiple of 8, capped at 2048) whose double-buffered
    in/out tiles fit a conservative VMEM budget (safe vs. v5e's 16 MiB default
    scoped limit and v7x's 64 MiB physical VMEM)."""
    lane_pad = ((max(n_classes, 1) + 127) // 128) * 128          # VMEM pads last dim to 128
    bytes_per_row = 2 * (2 * 4 + out_bytes) * lane_pad           # 2x dbuf * (2 f32 in + out)
    bm = vmem_budget_bytes // max(bytes_per_row, 1)
    bm = max(8, min(int(bm), 2048))
    bm = (bm // 8) * 8
    rows_pad8 = ((n_rows + 7) // 8) * 8                          # no point tiling past R
    return min(bm, rows_pad8)


@functools.partial(jax.jit, static_argnames=("out_dtype",))
def gumbel_softmax(logprobs, temperature, key, out_dtype=jnp.int32):
    """Pallas TPU forward of the GumbelSoftmax module.

    Returns one_hot(argmax(softmax((logprobs + gumbel)/temperature), -1)), which for
    temperature > 0 equals one_hot(argmax(logprobs + gumbel)). Same shape as
    `logprobs`, dtype `out_dtype` (use jnp.int8 to cut HBM writeback 4x if the
    caller does not need int32).
    """
    del temperature  # argmax is invariant to the positive temperature scale
    orig_shape = logprobs.shape
    C = orig_shape[-1]
    x = logprobs.reshape(-1, C)
    R = x.shape[0]

    # U(0,1) noise in plain JAX (works on TPU and on the interpret/CPU path).
    u = jax.random.uniform(key, (R, C), dtype=jnp.float32)

    out_bytes = np.dtype(out_dtype).itemsize
    bm = _pick_block_rows(R, C, out_bytes)

    # Pad rows so the grid covers R with full tiles (bm is a multiple of 8);
    # padded rows are computed then sliced off.
    Rp = ((R + bm - 1) // bm) * bm
    if Rp != R:
        pad = Rp - R
        x = jnp.pad(x, ((0, pad), (0, 0)))
        u = jnp.pad(u, ((0, pad), (0, 0)), constant_values=0.5)

    out = pl.pallas_call(
        _gumbel_argmax_onehot_kernel,
        out_shape=jax.ShapeDtypeStruct((Rp, C), out_dtype),
        grid=(Rp // bm,),
        in_specs=[
            pl.BlockSpec((bm, C), lambda i: (i, 0)),   # logprobs tile
            pl.BlockSpec((bm, C), lambda i: (i, 0)),   # uniform-noise tile
        ],
        out_specs=pl.BlockSpec((bm, C), lambda i: (i, 0)),
        compiler_params=pltpu.CompilerParams(
            # Row tiles are fully independent (noise comes in as data, no in-kernel
            # PRNG state) -> let Mosaic shard the grid across v7x's two TensorCores.
            dimension_semantics=("parallel",),
            vmem_limit_bytes=32 * 1024 * 1024,
        ),
    )(x, u)

    if Rp != R:
        out = out[:R]
    return out.reshape(orig_shape)
    # TODO(synk): if C << 128 in production, a transposed (rows-on-lanes) layout would
    # make stores unmasked / lane-dense at the cost of wrapper transposes.


if __name__ == "__main__":
    key = jax.random.PRNGKey(0)
    k_logits, k_noise = jax.random.split(key)

    # batch=2, seq=8, classes=16 (softmax/argmax over the class dim)
    logits = jax.random.normal(k_logits, (2, 8, 16), dtype=jnp.float32)
    logprobs = jax.nn.log_softmax(logits, axis=-1)
    temperature = jnp.float32(0.5)

    out = gumbel_softmax(logprobs, temperature, k_noise)
    out = jax.block_until_ready(out)

    # sanity: correct shape/dtype, valid one-hot along the last dim
    assert out.shape == logprobs.shape
    assert out.dtype == jnp.int32
    assert bool(jnp.all(jnp.sum(out, axis=-1) == 1))
    assert bool(jnp.all((out == 0) | (out == 1)))

    print("KERNEL_OK")
</pallas_src>

<mosaic_0001>
module attributes {stable_mosaic.version = 11 : i64} {
  func.func @_gumbel_argmax_onehot_kernel(%arg0: i32, %arg1: memref<16x16xf32, #tpu.memory_space<vmem>>, %arg2: memref<16x16xf32, #tpu.memory_space<vmem>>, %arg3: memref<16x16xi32, #tpu.memory_space<vmem>>) attributes {dimension_semantics = [#tpu.dimension_semantics<parallel>], iteration_bounds = array<i64: 1>, scalar_prefetch = 0 : i64, scratch_operands = 0 : i64, tpu.core_type = #tpu.core_type<tc>, window_params = [{transform_indices = @transform_0, window_bounds = array<i64: 16, 16>}, {transform_indices = @transform_1, window_bounds = array<i64: 16, 16>}, {transform_indices = @transform_2, window_bounds = array<i64: 16, 16>}]} {
    %c0 = arith.constant 0 : index
    %c0_0 = arith.constant 0 : index
    %0 = vector.load %arg1[%c0, %c0_0] : memref<16x16xf32, #tpu.memory_space<vmem>>, vector<16x16xf32>
    %c0_1 = arith.constant 0 : index
    %c0_2 = arith.constant 0 : index
    %1 = vector.load %arg2[%c0_1, %c0_2] : memref<16x16xf32, #tpu.memory_space<vmem>>, vector<16x16xf32>
    %cst = arith.constant 9.99999968E-21 : f32
    %2 = vector.broadcast %cst : f32 to vector<16x16xf32>
    %3 = arith.maximumf %1, %2 : vector<16x16xf32>
    %4 = math.log %3 : vector<16x16xf32>
    %cst_3 = arith.constant 0.000000e+00 : f32
    %5 = vector.broadcast %cst_3 : f32 to vector<16x16xf32>
    %6 = arith.subf %5, %4 : vector<16x16xf32>
    %7 = math.log %6 : vector<16x16xf32>
    %cst_4 = arith.constant 0.000000e+00 : f32
    %8 = vector.broadcast %cst_4 : f32 to vector<16x16xf32>
    %9 = arith.subf %8, %7 : vector<16x16xf32>
    %10 = arith.addf %0, %9 : vector<16x16xf32>
    %cst_5 = arith.constant dense<0xFF800000> : vector<16xf32>
    %11 = vector.multi_reduction <maximumf>, %10, %cst_5 [1] : vector<16x16xf32> to vector<16xf32>
    %12 = vector.shape_cast %11 : vector<16xf32> to vector<16x1xf32>
    %13 = tpu.iota {dimensions = array<i32: 1>} : vector<16x16xi32>
    %14 = vector.broadcast %12 : vector<16x1xf32> to vector<16x16xf32>
    %15 = arith.cmpf oge, %10, %14 : vector<16x16xf32>
    %c16_i32 = arith.constant 16 : i32
    %16 = vector.broadcast %c16_i32 : i32 to vector<16x16xi32>
    %17 = arith.select %15, %13, %16 : vector<16x16xi1>, vector<16x16xi32>
    %cst_6 = arith.constant dense<2147483647> : vector<16xi32>
    %18 = vector.multi_reduction <minsi>, %17, %cst_6 [1] : vector<16x16xi32> to vector<16xi32>
    %19 = vector.shape_cast %18 : vector<16xi32> to vector<16x1xi32>
    %20 = vector.broadcast %19 : vector<16x1xi32> to vector<16x16xi32>
    %21 = arith.cmpi eq, %13, %20 : vector<16x16xi32>
    %22 = arith.extui %21 : vector<16x16xi1> to vector<16x16xi32>
    %c0_7 = arith.constant 0 : index
    %c0_8 = arith.constant 0 : index
    %23 = vector.load %arg3[%c0_7, %c0_8] : memref<16x16xi32, #tpu.memory_space<vmem>>, vector<16x16xi32>
    tpu.vector_store %arg3[%c0_7, %c0_8], %22 {strides = array<i32>} : memref<16x16xi32, #tpu.memory_space<vmem>>, vector<16x16xi32>,
    return
  }
  func.func @transform_0(%arg0: i32) -> (i32, i32) {
    %c0_i32 = arith.constant 0 : i32
    %c0_i32_0 = arith.constant 0 : i32
    return %arg0, %c0_i32 : i32, i32
  }
  func.func @transform_1(%arg0: i32) -> (i32, i32) {
    %c0_i32 = arith.constant 0 : i32
    %c0_i32_0 = arith.constant 0 : i32
    return %arg0, %c0_i32 : i32, i32
  }
  func.func @transform_2(%arg0: i32) -> (i32, i32) {
    %c0_i32 = arith.constant 0 : i32
    %c0_i32_0 = arith.constant 0 : i32
    return %arg0, %c0_i32 : i32, i32
  }
}

</mosaic_0001>

<llo_original>
// kernel: gumbel_softmax.1
$region0: #{gumbel_softmax.1}
  #allocation0 [shape = 'u32[]', space=smem, size = 0x4, offset = 0x4, fixed_abs, tag = 'smem constant byte address 0x4 - core index']
  #allocation1 [shape = 'u32[144,128]{1,0:T(1,128)}', space=vmem, size = 0x12000, scoped, tag = 'internal scratch']
  %s0 = inlined_call_operand.vmem [shape: f32[16,16], index: 0, kind: input, shape index: {}]
  %s1 = inlined_call_operand.vmem [shape: f32[16,16], index: 1, kind: input, shape index: {}]
  %s2 = inlined_call_operand.hbm [shape: s32[16,16], index: 2, kind: output, shape index: {}]
  %s3 = sld [smem:[#allocation0]]
  $region18: #{gumbel_softmax.1} parent=0
    _
  %s5 = ssub.s32 1, %s3
  %s6 = scalar_select 0, %s5, %s3
  $region1: #{gumbel_softmax.1} parent=0
    #allocation2 [shape = 'u8[8192]{0}', space=vmem, size = 0x2000, scoped, tag = 'output window, operand 0, single buffered']
    #allocation3 [shape = 's32[1]{0}', space=sflag, size = 0x4, scoped, tag = 'scoped memory for gumbel_softmax.1']
    %7 = vsyncpa [#allocation3], 0
    // Predicated region
    $region2: #{gumbel_softmax.1} parent=1 // pred_check
      _
    $region3: #{gumbel_softmax.1} parent=1 // pred_check_branch
      %9 = sbr.rel (0) target = $region5
    $region4: #{gumbel_softmax.1} parent=1 // pred_region
      _
    $region5: #{gumbel_softmax.1} parent=1 // pred_fallthru
      _
    // Predicated region
    $region6: #{gumbel_softmax.1} parent=1 // pred_check
      _
    $region7: #{gumbel_softmax.1} parent=1 // pred_check_branch
      %11 = sbr.rel (0) target = $region9
    $region8: #{gumbel_softmax.1} parent=1 // pred_region
      _
    $region9: #{gumbel_softmax.1} parent=1 // pred_fallthru
      _
    %v12 = vld [vmem:[%s0] sm:$0xff]
    %v13 = vld [vmem:[%s0 + $0x8] sm:$0xff]
    %v14 = vld [vmem:[%s1] sm:$0xff]
    %v15 = vld [vmem:[%s1 + $0x8] sm:$0xff]
    %v16 = vmax.f32 %v14, 1e-20
    %v17 = vmax.f32 %v15, 1e-20
    %v18 = vlog2.pop %v16
    %v19 = vmul.f32 %v18, 0.6931472
    %v20 = vlog2.pop %v17
    %v21 = vmul.f32 %v20, 0.6931472
    %v22 = vsub.f32 0.0, %v19
    %v23 = vsub.f32 0.0, %v21
    %v24 = vlog2.pop %v22
    %v25 = vmul.f32 %v24, 0.6931472
    %v26 = vlog2.pop %v23
    %v27 = vmul.f32 %v26, 0.6931472
    %v28 = vsub.f32 0.0, %v25
    %v29 = vsub.f32 0.0, %v27
    %v30 = vadd.f32 %v12, %v28
    %v31 = vadd.f32 %v13, %v29
    %vm32 = vcmask 130048
    %v33 = vsel %vm32, %v30, -inf
    %34 = vmax.xlane.f32.xlu0 %v33
    %v35 = vpop.xlane.xlu0 %34
    %v36 = vsel %vm32, %v31, -inf
    %37 = vmax.xlane.f32.xlu0 %v36
    %v38 = vpop.xlane.xlu0 %37
    %v39 = vlaneseq
    %v40 = vand.u32 %v39, 127
    %vm41 = vcmp.ge.f32.partialorder %v30, %v35
    %vm42 = vcmp.ge.f32.partialorder %v31, %v38
    %v43 = vsel %vm41, %v40, 16
    %v44 = vsel %vm42, %v40, 16
    %v45 = vsel %vm32, %v43, 2147483647
    %v46 = vand.u32 %v45, 65535
    %v47 = vshra.s32 %v45, 16
    %v48 = vcvt.s32.f32 %v46
    %v49 = vcvt.s32.f32 %v47
    %50 = vmin.xlane.f32.xlu0 %v49
    %v51 = vpop.xlane.xlu0 %50
    %vm52 = vcmp.eq.f32.partialorder %v49, %v51
    %v53 = vsel %vm52, %v48, inf
    %54 = vmin.xlane.f32.xlu0 %v53
    %v55 = vpop.xlane.xlu0 %54
    %v56 = vcvt.f32.s32 %v55
    %v57 = vcvt.f32.s32 %v51
    %v58 = vshll.u32 %v57, 16
    %v59 = vadd.s32 %v58, %v56
    %v60 = vsel %vm32, %v44, 2147483647
    %v61 = vand.u32 %v60, 65535
    %v62 = vshra.s32 %v60, 16
    %v63 = vcvt.s32.f32 %v61
    %v64 = vcvt.s32.f32 %v62
    %65 = vmin.xlane.f32.xlu0 %v64
    %v66 = vpop.xlane.xlu0 %65
    %vm67 = vcmp.eq.f32.partialorder %v64, %v66
    %v68 = vsel %vm67, %v63, inf
    %69 = vmin.xlane.f32.xlu0 %v68
    %v70 = vpop.xlane.xlu0 %69
    %v71 = vcvt.f32.s32 %v70
    %v72 = vcvt.f32.s32 %v66
    %v73 = vshll.u32 %v72, 16
    %v74 = vadd.s32 %v73, %v71
    %vm75 = vcmp.eq.s32.totalorder %v40, %v59
    %vm76 = vcmp.eq.s32.totalorder %v40, %v74
    %v77 = vsel %vm75, 1, 0
    %v78 = vsel %vm76, 1, 0
    %79 = vst.msk [vmem:[#allocation2] sm:$0xff] %vm32, %v77
    %80 = vst.msk [vmem:[#allocation2 + $0x8] sm:$0xff] %vm32, %v78
    // Predicated region
    $region10: #{gumbel_softmax.1} parent=1 // pred_check
      _
    $region11: #{gumbel_softmax.1} parent=1 // pred_check_branch
      %82 = sbr.rel (0) target = $region13
    $region12: #{gumbel_softmax.1} parent=1 // pred_region
      %s84 = ssub.s32 256, 256
      %85 = vsyncadd [#allocation3], %s84
      %s86 = sshll.u32 [#allocation2], 4
      %s87 = int_to_ptr.vmem [resolvable:$true] %s86
      %92 = dma.vmem_to_hbm [thread:$0]  %s87, 256, %s2, [#allocation3], 128, 128, 8
    $region13: #{gumbel_softmax.1} parent=1 // pred_fallthru
      _
    // Predicated region
    $region14: #{gumbel_softmax.1} parent=1 // pred_check
      _
    $region15: #{gumbel_softmax.1} parent=1 // pred_check_branch
      %94 = sbr.rel (0) target = $region17
    $region16: #{gumbel_softmax.1} parent=1 // pred_region
      %95 = dma.done [#allocation3], 256
    $region17: #{gumbel_softmax.1} parent=1 // pred_fallthru
      _
    %96 = vsyncpa [#allocation3], 1

</llo_original>
